<compile_context>
chip_gen: v5e
topology: v5e:2x2
jax: 0.10.0
libtpu: 0.0.40
codegen_flags: <defaults>
</compile_context>

<pallas_src>
import numpy as np
import jax
import jax.numpy as jnp
from jax.experimental import pallas as pl
from jax.experimental.pallas import tpu as pltpu


def diffusion_trainer_kernel(coef_ref, w_ref, x_ref, noise_ref, loss_ref):
    """One grid step handles one batch element.

    coef_ref : SMEM (B, 2 + C) f32 : [sqrt_ab[t_b], sqrt_1m_ab[t_b], bias+temb[t_b, :]]
    w_ref    : SMEM (C, C)     f32 : 1x1-conv weight (read as scalars)
    x_ref/noise_ref/loss_ref   : VMEM blocks of shape (1, C, HW)  (HW on lanes)
    """
    b = pl.program_id(0)

    sab = coef_ref[b, 0]      # sqrt(alphas_bar[t_b])
    somab = coef_ref[b, 1]    # sqrt(1 - alphas_bar[t_b])

    x = x_ref[0]              # (C, HW) f32
    n = noise_ref[0]          # (C, HW) f32
    C, HW = x.shape

    # q-sample: x_t = sqrt_ab * x_0 + sqrt_(1-ab) * noise   (scalar-broadcast VPU FMAs)
    x_t = sab * x + somab * n

    # synthetic model: 1x1 conv (channel mix) + (bias + time embedding), all on the VPU.
    # pred[co, :] = sum_ci w[ci, co] * x_t[ci, :] + (bias[co] + temb[t_b, co])
    for co in range(C):
        acc = jnp.full((1, HW), coef_ref[b, 2 + co], dtype=jnp.float32)
        for ci in range(C):
            acc = acc + w_ref[ci, co] * x_t[ci:ci + 1, :]
        # mse_loss(pred, noise, reduction='none') for this output channel
        d = acc - n[co:co + 1, :]
        loss_ref[0, co:co + 1, :] = d * d


def gaussian_diffusion_trainer_forward(x_0_nchw, t, noise_nchw, params,
                                       sqrt_alphas_bar, sqrt_one_minus_alphas_bar):
    """Pallas-backed forward. Returns elementwise MSE loss with NCHW shape of x_0."""
    B, C, H, W = x_0_nchw.shape
    HW = H * W

    # NCHW -> (B, C, HW): pure reshape, no transpose / extra HBM traffic.
    x = x_0_nchw.reshape(B, C, HW).astype(jnp.float32)
    noise = noise_nchw.reshape(B, C, HW).astype(jnp.float32)

    # extract(): gather schedule coefficients at t; fold conv bias into the temb gather.
    sab = sqrt_alphas_bar[t].astype(jnp.float32)                    # (B,)
    somab = sqrt_one_minus_alphas_bar[t].astype(jnp.float32)        # (B,)
    add = (params["temb_table"][t]
           + params["bias"].reshape(1, C)).astype(jnp.float32)      # (B, C)
    coef = jnp.concatenate([sab[:, None], somab[:, None], add], axis=1)  # (B, 2+C)

    w = params["w"].astype(jnp.float32)                             # (C, C)

    loss = pl.pallas_call(
        diffusion_trainer_kernel,
        out_shape=jax.ShapeDtypeStruct((B, C, HW), jnp.float32),
        grid=(B,),
        in_specs=[
            pl.BlockSpec(memory_space=pltpu.MemorySpace.SMEM),      # coef (B, 2+C)
            pl.BlockSpec(memory_space=pltpu.MemorySpace.SMEM),      # w    (C, C)
            pl.BlockSpec((1, C, HW), lambda b: (b, 0, 0)),          # x
            pl.BlockSpec((1, C, HW), lambda b: (b, 0, 0)),          # noise
        ],
        out_specs=pl.BlockSpec((1, C, HW), lambda b: (b, 0, 0)),
        compiler_params=pltpu.CompilerParams(
            dimension_semantics=("parallel",)),
    )(coef, w, x, noise)

    # (B, C, HW) -> NCHW (pure reshape)
    return loss.reshape(B, C, H, W)


def make_schedule(beta_1, beta_T, T):
    """Replicates register_buffer math: linspace in double, cumprod, sqrt; then cast to f32."""
    betas = np.linspace(beta_1, beta_T, T, dtype=np.float64)
    alphas = 1.0 - betas
    alphas_bar = np.cumprod(alphas, axis=0)
    sqrt_alphas_bar = np.sqrt(alphas_bar).astype(np.float32)
    sqrt_one_minus_alphas_bar = np.sqrt(1.0 - alphas_bar).astype(np.float32)
    return jnp.asarray(sqrt_alphas_bar), jnp.asarray(sqrt_one_minus_alphas_bar)


if __name__ == "__main__":
    B, C, H, W = 2, 4, 16, 16
    T = 100
    beta_1, beta_T = 1e-4, 0.02

    key = jax.random.PRNGKey(0)
    k_x, k_t, k_noise, k_w, k_b, k_temb = jax.random.split(key, 6)

    # inputs (PyTorch layout: NCHW)
    x_0 = jax.random.normal(k_x, (B, C, H, W), dtype=jnp.float32)
    # TODO(synk): torch RNG (randint/randn inside forward) is not bit-reproducible in JAX;
    # sampling is done with jax.random here and passed into the kernel.
    t = jax.random.randint(k_t, (B,), 0, T, dtype=jnp.int32)
    noise = jax.random.normal(k_noise, (B, C, H, W), dtype=jnp.float32)

    # deterministic synthetic model parameters
    params = {
        "w": (jax.random.normal(k_w, (C, C), dtype=jnp.float32) * 0.1
              + jnp.eye(C, dtype=jnp.float32)),
        "bias": jax.random.normal(k_b, (1, C), dtype=jnp.float32) * 0.01,
        "temb_table": jax.random.normal(k_temb, (T, C), dtype=jnp.float32) * 0.01,
    }

    sqrt_ab, sqrt_omab = make_schedule(beta_1, beta_T, T)

    loss = gaussian_diffusion_trainer_forward(x_0, t, noise, params, sqrt_ab, sqrt_omab)
    loss = jax.block_until_ready(loss)

    # quick sanity check against a pure-JAX reference (same semantics as the torch module)
    def ref_forward():
        sab_ = sqrt_ab[t].reshape(B, 1, 1, 1)
        somab_ = sqrt_omab[t].reshape(B, 1, 1, 1)
        x_t = sab_ * x_0 + somab_ * noise
        pred = (jnp.einsum('bchw,cd->bdhw', x_t, params["w"])
                + params["bias"].reshape(1, C, 1, 1)
                + params["temb_table"][t][:, :, None, None])
        return (pred - noise) ** 2

    ref = ref_forward()
    assert loss.shape == (B, C, H, W)
    np.testing.assert_allclose(np.asarray(loss), np.asarray(ref), rtol=1e-5, atol=1e-5)

    print("KERNEL_OK")
</pallas_src>

<mosaic_0001>
module attributes {stable_mosaic.version = 11 : i64} {
  func.func @diffusion_trainer_kernel(%arg0: i32, %arg1: memref<2x6xf32, #tpu.memory_space<smem>>, %arg2: memref<4x4xf32, #tpu.memory_space<smem>>, %arg3: memref<1x4x256xf32, #tpu.memory_space<vmem>>, %arg4: memref<1x4x256xf32, #tpu.memory_space<vmem>>, %arg5: memref<1x4x256xf32, #tpu.memory_space<vmem>>) attributes {dimension_semantics = [#tpu.dimension_semantics<parallel>], iteration_bounds = array<i64: 2>, scalar_prefetch = 0 : i64, scratch_operands = 0 : i64, tpu.core_type = #tpu.core_type<tc>, window_params = [{transform_indices = @transform_0, window_bounds = array<i64: 2, 6>}, {transform_indices = @transform_1, window_bounds = array<i64: 4, 4>}, {transform_indices = @transform_2, window_bounds = array<i64: 1, 4, 256>}, {transform_indices = @transform_3, window_bounds = array<i64: 1, 4, 256>}, {transform_indices = @transform_4, window_bounds = array<i64: 1, 4, 256>}]} {
    %0 = arith.index_cast %arg0 : i32 to index
    %c0 = arith.constant 0 : index
    %1 = memref.load %arg1[%0, %c0] : memref<2x6xf32, #tpu.memory_space<smem>>
    %2 = arith.index_cast %arg0 : i32 to index
    %c1 = arith.constant 1 : index
    %3 = memref.load %arg1[%2, %c1] : memref<2x6xf32, #tpu.memory_space<smem>>
    %c0_0 = arith.constant 0 : index
    %c0_1 = arith.constant 0 : index
    %c0_2 = arith.constant 0 : index
    %4 = vector.load %arg3[%c0_0, %c0_1, %c0_2] : memref<1x4x256xf32, #tpu.memory_space<vmem>>, vector<1x4x256xf32>
    %5 = vector.shape_cast %4 : vector<1x4x256xf32> to vector<4x256xf32>
    %c0_3 = arith.constant 0 : index
    %c0_4 = arith.constant 0 : index
    %c0_5 = arith.constant 0 : index
    %6 = vector.load %arg4[%c0_3, %c0_4, %c0_5] : memref<1x4x256xf32, #tpu.memory_space<vmem>>, vector<1x4x256xf32>
    %7 = vector.shape_cast %6 : vector<1x4x256xf32> to vector<4x256xf32>
    %8 = vector.broadcast %1 : f32 to vector<4x256xf32>
    %9 = arith.mulf %8, %5 : vector<4x256xf32>
    %10 = vector.broadcast %3 : f32 to vector<4x256xf32>
    %11 = arith.mulf %10, %7 : vector<4x256xf32>
    %12 = arith.addf %9, %11 : vector<4x256xf32>
    %13 = arith.index_cast %arg0 : i32 to index
    %c2 = arith.constant 2 : index
    %14 = memref.load %arg1[%13, %c2] : memref<2x6xf32, #tpu.memory_space<smem>>
    %15 = vector.broadcast %14 : f32 to vector<1x256xf32>
    %c0_6 = arith.constant 0 : index
    %c0_7 = arith.constant 0 : index
    %16 = memref.load %arg2[%c0_6, %c0_7] : memref<4x4xf32, #tpu.memory_space<smem>>
    %17 = vector.extract_strided_slice %12 {offsets = [0, 0], sizes = [1, 256], strides = [1, 1]} : vector<4x256xf32> to vector<1x256xf32>
    %18 = vector.broadcast %16 : f32 to vector<1x256xf32>
    %19 = arith.mulf %18, %17 : vector<1x256xf32>
    %20 = arith.addf %15, %19 : vector<1x256xf32>
    %c1_8 = arith.constant 1 : index
    %c0_9 = arith.constant 0 : index
    %21 = memref.load %arg2[%c1_8, %c0_9] : memref<4x4xf32, #tpu.memory_space<smem>>
    %22 = vector.extract_strided_slice %12 {offsets = [1, 0], sizes = [1, 256], strides = [1, 1]} : vector<4x256xf32> to vector<1x256xf32>
    %23 = vector.broadcast %21 : f32 to vector<1x256xf32>
    %24 = arith.mulf %23, %22 : vector<1x256xf32>
    %25 = arith.addf %20, %24 : vector<1x256xf32>
    %c2_10 = arith.constant 2 : index
    %c0_11 = arith.constant 0 : index
    %26 = memref.load %arg2[%c2_10, %c0_11] : memref<4x4xf32, #tpu.memory_space<smem>>
    %27 = vector.extract_strided_slice %12 {offsets = [2, 0], sizes = [1, 256], strides = [1, 1]} : vector<4x256xf32> to vector<1x256xf32>
    %28 = vector.broadcast %26 : f32 to vector<1x256xf32>
    %29 = arith.mulf %28, %27 : vector<1x256xf32>
    %30 = arith.addf %25, %29 : vector<1x256xf32>
    %c3 = arith.constant 3 : index
    %c0_12 = arith.constant 0 : index
    %31 = memref.load %arg2[%c3, %c0_12] : memref<4x4xf32, #tpu.memory_space<smem>>
    %32 = vector.extract_strided_slice %12 {offsets = [3, 0], sizes = [1, 256], strides = [1, 1]} : vector<4x256xf32> to vector<1x256xf32>
    %33 = vector.broadcast %31 : f32 to vector<1x256xf32>
    %34 = arith.mulf %33, %32 : vector<1x256xf32>
    %35 = arith.addf %30, %34 : vector<1x256xf32>
    %36 = vector.extract_strided_slice %7 {offsets = [0, 0], sizes = [1, 256], strides = [1, 1]} : vector<4x256xf32> to vector<1x256xf32>
    %37 = arith.subf %35, %36 : vector<1x256xf32>
    %38 = arith.mulf %37, %37 : vector<1x256xf32>
    %c0_13 = arith.constant 0 : index
    %c0_14 = arith.constant 0 : index
    %c0_15 = arith.constant 0 : index
    %39 = vector.load %arg5[%c0_13, %c0_14, %c0_15] : memref<1x4x256xf32, #tpu.memory_space<vmem>>, vector<1x1x256xf32>
    %40 = vector.shape_cast %39 : vector<1x1x256xf32> to vector<1x256xf32>
    %41 = vector.shape_cast %38 : vector<1x256xf32> to vector<1x1x256xf32>
    tpu.vector_store %arg5[%c0_13, %c0_14, %c0_15], %41 {strides = array<i32>} : memref<1x4x256xf32, #tpu.memory_space<vmem>>, vector<1x1x256xf32>,
    %42 = arith.index_cast %arg0 : i32 to index
    %c3_16 = arith.constant 3 : index
    %43 = memref.load %arg1[%42, %c3_16] : memref<2x6xf32, #tpu.memory_space<smem>>
    %44 = vector.broadcast %43 : f32 to vector<1x256xf32>
    %c0_17 = arith.constant 0 : index
    %c1_18 = arith.constant 1 : index
    %45 = memref.load %arg2[%c0_17, %c1_18] : memref<4x4xf32, #tpu.memory_space<smem>>
    %46 = vector.extract_strided_slice %12 {offsets = [0, 0], sizes = [1, 256], strides = [1, 1]} : vector<4x256xf32> to vector<1x256xf32>
    %47 = vector.broadcast %45 : f32 to vector<1x256xf32>
    %48 = arith.mulf %47, %46 : vector<1x256xf32>
    %49 = arith.addf %44, %48 : vector<1x256xf32>
    %c1_19 = arith.constant 1 : index
    %c1_20 = arith.constant 1 : index
    %50 = memref.load %arg2[%c1_19, %c1_20] : memref<4x4xf32, #tpu.memory_space<smem>>
    %51 = vector.extract_strided_slice %12 {offsets = [1, 0], sizes = [1, 256], strides = [1, 1]} : vector<4x256xf32> to vector<1x256xf32>
    %52 = vector.broadcast %50 : f32 to vector<1x256xf32>
    %53 = arith.mulf %52, %51 : vector<1x256xf32>
    %54 = arith.addf %49, %53 : vector<1x256xf32>
    %c2_21 = arith.constant 2 : index
    %c1_22 = arith.constant 1 : index
    %55 = memref.load %arg2[%c2_21, %c1_22] : memref<4x4xf32, #tpu.memory_space<smem>>
    %56 = vector.extract_strided_slice %12 {offsets = [2, 0], sizes = [1, 256], strides = [1, 1]} : vector<4x256xf32> to vector<1x256xf32>
    %57 = vector.broadcast %55 : f32 to vector<1x256xf32>
    %58 = arith.mulf %57, %56 : vector<1x256xf32>
    %59 = arith.addf %54, %58 : vector<1x256xf32>
    %c3_23 = arith.constant 3 : index
    %c1_24 = arith.constant 1 : index
    %60 = memref.load %arg2[%c3_23, %c1_24] : memref<4x4xf32, #tpu.memory_space<smem>>
    %61 = vector.extract_strided_slice %12 {offsets = [3, 0], sizes = [1, 256], strides = [1, 1]} : vector<4x256xf32> to vector<1x256xf32>
    %62 = vector.broadcast %60 : f32 to vector<1x256xf32>
    %63 = arith.mulf %62, %61 : vector<1x256xf32>
    %64 = arith.addf %59, %63 : vector<1x256xf32>
    %65 = vector.extract_strided_slice %7 {offsets = [1, 0], sizes = [1, 256], strides = [1, 1]} : vector<4x256xf32> to vector<1x256xf32>
    %66 = arith.subf %64, %65 : vector<1x256xf32>
    %67 = arith.mulf %66, %66 : vector<1x256xf32>
    %c0_25 = arith.constant 0 : index
    %c1_26 = arith.constant 1 : index
    %c0_27 = arith.constant 0 : index
    %68 = vector.load %arg5[%c0_25, %c1_26, %c0_27] : memref<1x4x256xf32, #tpu.memory_space<vmem>>, vector<1x1x256xf32>
    %69 = vector.shape_cast %68 : vector<1x1x256xf32> to vector<1x256xf32>
    %70 = vector.shape_cast %67 : vector<1x256xf32> to vector<1x1x256xf32>
    tpu.vector_store %arg5[%c0_25, %c1_26, %c0_27], %70 {strides = array<i32>} : memref<1x4x256xf32, #tpu.memory_space<vmem>>, vector<1x1x256xf32>,
    %71 = arith.index_cast %arg0 : i32 to index
    %c4 = arith.constant 4 : index
    %72 = memref.load %arg1[%71, %c4] : memref<2x6xf32, #tpu.memory_space<smem>>
    %73 = vector.broadcast %72 : f32 to vector<1x256xf32>
    %c0_28 = arith.constant 0 : index
    %c2_29 = arith.constant 2 : index
    %74 = memref.load %arg2[%c0_28, %c2_29] : memref<4x4xf32, #tpu.memory_space<smem>>
    %75 = vector.extract_strided_slice %12 {offsets = [0, 0], sizes = [1, 256], strides = [1, 1]} : vector<4x256xf32> to vector<1x256xf32>
    %76 = vector.broadcast %74 : f32 to vector<1x256xf32>
    %77 = arith.mulf %76, %75 : vector<1x256xf32>
    %78 = arith.addf %73, %77 : vector<1x256xf32>
    %c1_30 = arith.constant 1 : index
    %c2_31 = arith.constant 2 : index
    %79 = memref.load %arg2[%c1_30, %c2_31] : memref<4x4xf32, #tpu.memory_space<smem>>
    %80 = vector.extract_strided_slice %12 {offsets = [1, 0], sizes = [1, 256], strides = [1, 1]} : vector<4x256xf32> to vector<1x256xf32>
    %81 = vector.broadcast %79 : f32 to vector<1x256xf32>
    %82 = arith.mulf %81, %80 : vector<1x256xf32>
    %83 = arith.addf %78, %82 : vector<1x256xf32>
    %c2_32 = arith.constant 2 : index
    %c2_33 = arith.constant 2 : index
    %84 = memref.load %arg2[%c2_32, %c2_33] : memref<4x4xf32, #tpu.memory_space<smem>>
    %85 = vector.extract_strided_slice %12 {offsets = [2, 0], sizes = [1, 256], strides = [1, 1]} : vector<4x256xf32> to vector<1x256xf32>
    %86 = vector.broadcast %84 : f32 to vector<1x256xf32>
    %87 = arith.mulf %86, %85 : vector<1x256xf32>
    %88 = arith.addf %83, %87 : vector<1x256xf32>
    %c3_34 = arith.constant 3 : index
    %c2_35 = arith.constant 2 : index
    %89 = memref.load %arg2[%c3_34, %c2_35] : memref<4x4xf32, #tpu.memory_space<smem>>
    %90 = vector.extract_strided_slice %12 {offsets = [3, 0], sizes = [1, 256], strides = [1, 1]} : vector<4x256xf32> to vector<1x256xf32>
    %91 = vector.broadcast %89 : f32 to vector<1x256xf32>
    %92 = arith.mulf %91, %90 : vector<1x256xf32>
    %93 = arith.addf %88, %92 : vector<1x256xf32>
    %94 = vector.extract_strided_slice %7 {offsets = [2, 0], sizes = [1, 256], strides = [1, 1]} : vector<4x256xf32> to vector<1x256xf32>
    %95 = arith.subf %93, %94 : vector<1x256xf32>
    %96 = arith.mulf %95, %95 : vector<1x256xf32>
    %c0_36 = arith.constant 0 : index
    %c2_37 = arith.constant 2 : index
    %c0_38 = arith.constant 0 : index
    %97 = vector.load %arg5[%c0_36, %c2_37, %c0_38] : memref<1x4x256xf32, #tpu.memory_space<vmem>>, vector<1x1x256xf32>
    %98 = vector.shape_cast %97 : vector<1x1x256xf32> to vector<1x256xf32>
    %99 = vector.shape_cast %96 : vector<1x256xf32> to vector<1x1x256xf32>
    tpu.vector_store %arg5[%c0_36, %c2_37, %c0_38], %99 {strides = array<i32>} : memref<1x4x256xf32, #tpu.memory_space<vmem>>, vector<1x1x256xf32>,
    %100 = arith.index_cast %arg0 : i32 to index
    %c5 = arith.constant 5 : index
    %101 = memref.load %arg1[%100, %c5] : memref<2x6xf32, #tpu.memory_space<smem>>
    %102 = vector.broadcast %101 : f32 to vector<1x256xf32>
    %c0_39 = arith.constant 0 : index
    %c3_40 = arith.constant 3 : index
    %103 = memref.load %arg2[%c0_39, %c3_40] : memref<4x4xf32, #tpu.memory_space<smem>>
    %104 = vector.extract_strided_slice %12 {offsets = [0, 0], sizes = [1, 256], strides = [1, 1]} : vector<4x256xf32> to vector<1x256xf32>
    %105 = vector.broadcast %103 : f32 to vector<1x256xf32>
    %106 = arith.mulf %105, %104 : vector<1x256xf32>
    %107 = arith.addf %102, %106 : vector<1x256xf32>
    %c1_41 = arith.constant 1 : index
    %c3_42 = arith.constant 3 : index
    %108 = memref.load %arg2[%c1_41, %c3_42] : memref<4x4xf32, #tpu.memory_space<smem>>
    %109 = vector.extract_strided_slice %12 {offsets = [1, 0], sizes = [1, 256], strides = [1, 1]} : vector<4x256xf32> to vector<1x256xf32>
    %110 = vector.broadcast %108 : f32 to vector<1x256xf32>
    %111 = arith.mulf %110, %109 : vector<1x256xf32>
    %112 = arith.addf %107, %111 : vector<1x256xf32>
    %c2_43 = arith.constant 2 : index
    %c3_44 = arith.constant 3 : index
    %113 = memref.load %arg2[%c2_43, %c3_44] : memref<4x4xf32, #tpu.memory_space<smem>>
    %114 = vector.extract_strided_slice %12 {offsets = [2, 0], sizes = [1, 256], strides = [1, 1]} : vector<4x256xf32> to vector<1x256xf32>
    %115 = vector.broadcast %113 : f32 to vector<1x256xf32>
    %116 = arith.mulf %115, %114 : vector<1x256xf32>
    %117 = arith.addf %112, %116 : vector<1x256xf32>
    %c3_45 = arith.constant 3 : index
    %c3_46 = arith.constant 3 : index
    %118 = memref.load %arg2[%c3_45, %c3_46] : memref<4x4xf32, #tpu.memory_space<smem>>
    %119 = vector.extract_strided_slice %12 {offsets = [3, 0], sizes = [1, 256], strides = [1, 1]} : vector<4x256xf32> to vector<1x256xf32>
    %120 = vector.broadcast %118 : f32 to vector<1x256xf32>
    %121 = arith.mulf %120, %119 : vector<1x256xf32>
    %122 = arith.addf %117, %121 : vector<1x256xf32>
    %123 = vector.extract_strided_slice %7 {offsets = [3, 0], sizes = [1, 256], strides = [1, 1]} : vector<4x256xf32> to vector<1x256xf32>
    %124 = arith.subf %122, %123 : vector<1x256xf32>
    %125 = arith.mulf %124, %124 : vector<1x256xf32>
    %c0_47 = arith.constant 0 : index
    %c3_48 = arith.constant 3 : index
    %c0_49 = arith.constant 0 : index
    %126 = vector.load %arg5[%c0_47, %c3_48, %c0_49] : memref<1x4x256xf32, #tpu.memory_space<vmem>>, vector<1x1x256xf32>
    %127 = vector.shape_cast %126 : vector<1x1x256xf32> to vector<1x256xf32>
    %128 = vector.shape_cast %125 : vector<1x256xf32> to vector<1x1x256xf32>
    tpu.vector_store %arg5[%c0_47, %c3_48, %c0_49], %128 {strides = array<i32>} : memref<1x4x256xf32, #tpu.memory_space<vmem>>, vector<1x1x256xf32>,
    return
  }
  func.func @transform_0(%arg0: i32) -> (i32, i32) {
    %c0_i32 = arith.constant 0 : i32
    %c0_i32_0 = arith.constant 0 : i32
    %c0_i32_1 = arith.constant 0 : i32
    return %c0_i32, %c0_i32_0 : i32, i32
  }
  func.func @transform_1(%arg0: i32) -> (i32, i32) {
    %c0_i32 = arith.constant 0 : i32
    %c0_i32_0 = arith.constant 0 : i32
    %c0_i32_1 = arith.constant 0 : i32
    return %c0_i32, %c0_i32_0 : i32, i32
  }
  func.func @transform_2(%arg0: i32) -> (i32, i32, i32) {
    %c0_i32 = arith.constant 0 : i32
    %c0_i32_0 = arith.constant 0 : i32
    %c0_i32_1 = arith.constant 0 : i32
    return %arg0, %c0_i32, %c0_i32_0 : i32, i32, i32
  }
  func.func @transform_3(%arg0: i32) -> (i32, i32, i32) {
    %c0_i32 = arith.constant 0 : i32
    %c0_i32_0 = arith.constant 0 : i32
    %c0_i32_1 = arith.constant 0 : i32
    return %arg0, %c0_i32, %c0_i32_0 : i32, i32, i32
  }
  func.func @transform_4(%arg0: i32) -> (i32, i32, i32) {
    %c0_i32 = arith.constant 0 : i32
    %c0_i32_0 = arith.constant 0 : i32
    %c0_i32_1 = arith.constant 0 : i32
    return %arg0, %c0_i32, %c0_i32_0 : i32, i32, i32
  }
}

</mosaic_0001>

<llo_original>
// kernel: tpu_custom_call.1
$region0: #{tpu_custom_call.1}
  #allocation0 [shape = 'u32[]', space=smem, size = 0x4, offset = 0x4, fixed_abs, tag = 'smem constant byte address 0x4 - core index']
  #allocation1 [shape = 'u32[72,128]{1,0:T(1,128)}', space=vmem, size = 0x9000, scoped, tag = 'internal scratch']
  %s0 = inlined_call_operand.hbm [shape: f32[2,6], index: 0, kind: input, shape index: {}]
  %s1 = inlined_call_operand.hbm [shape: f32[4,4], index: 1, kind: input, shape index: {}]
  %s2 = inlined_call_operand.hbm [shape: f32[2,4,256], index: 2, kind: input, shape index: {}]
  %s3 = inlined_call_operand.hbm [shape: f32[2,4,256], index: 3, kind: input, shape index: {}]
  %s4 = inlined_call_operand.hbm [shape: f32[2,4,256], index: 4, kind: output, shape index: {}]
  %s5 = sld [smem:[#allocation0]]
  $region65: #{tpu_custom_call.1} parent=0
    _
  %s7 = ssub.s32 1, %s5
  %s8 = scalar_select 0, %s7, %s5
  $region1: #{tpu_custom_call.1} parent=0
    #allocation2 [shape = 'u8[1024]{0}', space=smem, size = 0x400, scoped, tag = 'input window, operand 0, single buffered']
    #allocation3 [shape = 's32[2]{0}', space=sflag, size = 0x8, scoped, tag = 'scoped memory for tpu_custom_call.1']
    #allocation4 [shape = 's32[2]{0}', space=sflag, size = 0x8, scoped, tag = 'scoped memory for tpu_custom_call.1']
    #allocation5 [shape = 's32[2]{0}', space=sflag, size = 0x8, scoped, tag = 'scoped memory for tpu_custom_call.1']
    #allocation6 [shape = 'u8[2048]{0}', space=smem, size = 0x800, scoped, tag = 'input window, operand 1, single buffered']
    #allocation7 [shape = 's32[1]{0}', space=sflag, size = 0x4, scoped, tag = 'scoped memory for tpu_custom_call.1']
    #allocation8 [shape = 'u8[8192]{0}', space=vmem, size = 0x2000, scoped, tag = 'input window, operand 2']
    #allocation9 [shape = 'u8[8192]{0}', space=vmem, size = 0x2000, scoped, tag = 'input window, operand 3']
    #allocation10 [shape = 's32[2]{0}', space=sflag, size = 0x8, scoped, tag = 'scoped memory for tpu_custom_call.1']
    #allocation11 [shape = 'u8[8192]{0}', space=vmem, size = 0x2000, scoped, tag = 'output window, operand 0']
    %9 = vsyncpa [#allocation5], 0
    %10 = vsyncpa [#allocation7], 0
    %11 = vsyncpa [#allocation3], 0
    %s12 = scalar_lea.sflag [#allocation3], 1
    %13 = vsyncpa %s12, 0
    %14 = vsyncpa [#allocation10], 0
    %s15 = scalar_lea.sflag [#allocation10], 1
    %16 = vsyncpa %s15, 0
    %17 = vsyncpa [#allocation4], 0
    %s18 = scalar_lea.sflag [#allocation4], 1
    %19 = vsyncpa %s18, 0
    loop: start=0, step=1, limit=4
    $region2: #{tpu_custom_call.1} parent=1 // loop_pre_header
      _
    $region3: #{tpu_custom_call.1} parent=1 // loop_header
      %s21 = sphi 0, %s25
      %p22 = scmp.ge.s32.totalorder %s21, 4
      %s29 = sphi 0, %s29
      %s31 = sphi 0, %s29
      %s32 = sphi 0, %s31
      %s46 = sphi 0, %s32
      %s50 = sphi 0, %s50
      %s52 = sphi 0, %s50
      %s53 = sphi 0, %s52
      %s67 = sphi 0, %s53
      %s73 = sphi 0, %s75
      %s76 = sphi 0, %s73
      %s77 = sphi 0, %s76
      %s93 = sphi 0, %s77
      %s99 = sphi 0, %s101
      %s102 = sphi 0, %s99
      %s103 = sphi 0, %s102
      %s119 = sphi 0, %s103
      %s125 = sphi 0, %s127
      %s128 = sphi 0, %s125
      %s129 = sphi 0, %s128
      %s145 = sphi 0, %s129
    $region4: #{tpu_custom_call.1} parent=1 // loop_header_branch
      %24 = sbr.rel (%p22) target = $region8
    $region5: #{tpu_custom_call.1} parent=1 // loop_body
      %s26 = ssub.s32 %s21, 1
      %s27 = ssub.s32 %s21, 2
      %s28 = sadd.s32 %s21, 1
      %s30 = sadd.s32 %s29, 1
      %p33 = scmp.eq.s32.totalorder %s21, 1
      %p34 = scmp.ne.s32.totalorder %s29, %s31
      %p35 = scmp.eq.s32.totalorder %s21, 0
      %p36 = por %p34, %p35
      %p37 = scmp.ne.s32.totalorder %s29, %s31
      %p38 = scmp.eq.s32.totalorder %s26, 1
      %p39 = por %p37, %p38
      %p40 = scmp.ne.s32.totalorder %s31, %s32
      %p41 = scmp.eq.s32.totalorder %s26, 0
      %p42 = por %p40, %p41
      %p43 = scmp.ne.s32.totalorder %s31, %s32
      %p44 = scmp.eq.s32.totalorder %s27, 1
      %p45 = por %p43, %p44
      %p47 = scmp.ne.s32.totalorder %s32, %s46
      %p48 = scmp.eq.s32.totalorder %s27, 0
      %p49 = por %p47, %p48
      %s51 = sadd.s32 %s50, 1
      %p54 = scmp.eq.s32.totalorder %s21, 1
      %p55 = scmp.ne.s32.totalorder %s50, %s52
      %p56 = scmp.eq.s32.totalorder %s21, 0
      %p57 = por %p55, %p56
      %p58 = scmp.ne.s32.totalorder %s50, %s52
      %p59 = scmp.eq.s32.totalorder %s26, 1
      %p60 = por %p58, %p59
      %p61 = scmp.ne.s32.totalorder %s52, %s53
      %p62 = scmp.eq.s32.totalorder %s26, 0
      %p63 = por %p61, %p62
      %p64 = scmp.ne.s32.totalorder %s52, %s53
      %p65 = scmp.eq.s32.totalorder %s27, 1
      %p66 = por %p64, %p65
      %p68 = scmp.ne.s32.totalorder %s53, %s67
      %p69 = scmp.eq.s32.totalorder %s27, 0
      %p70 = por %p68, %p69
      %s71 = ssub.s32 %s21, %s28
      %p72 = scmp.eq.s32.totalorder %s71, 0
      %s74 = sadd.s32 %s73, 1
      %s75 = scalar_select %p72, %s73, %s74
      %p78 = pneg %p72
      %p79 = scmp.eq.s32.totalorder %s21, 1
      %p80 = por %p78, %p79
      %p81 = scmp.ne.s32.totalorder %s73, %s76
      %p82 = scmp.eq.s32.totalorder %s21, 0
      %p83 = por %p81, %p82
      %p84 = scmp.ne.s32.totalorder %s73, %s76
      %p85 = scmp.eq.s32.totalorder %s26, 1
      %p86 = por %p84, %p85
      %p87 = scmp.ne.s32.totalorder %s76, %s77
      %p88 = scmp.eq.s32.totalorder %s26, 0
      %p89 = por %p87, %p88
      %p90 = scmp.ne.s32.totalorder %s76, %s77
      %p91 = scmp.eq.s32.totalorder %s27, 1
      %p92 = por %p90, %p91
      %p94 = scmp.ne.s32.totalorder %s77, %s93
      %p95 = scmp.eq.s32.totalorder %s27, 0
      %p96 = por %p94, %p95
      %s97 = ssub.s32 %s21, %s28
      %p98 = scmp.eq.s32.totalorder %s97, 0
      %s100 = sadd.s32 %s99, 1
      %s101 = scalar_select %p98, %s99, %s100
      %p104 = pneg %p98
      %p105 = scmp.eq.s32.totalorder %s21, 1
      %p106 = por %p104, %p105
      %p107 = scmp.ne.s32.totalorder %s99, %s102
      %p108 = scmp.eq.s32.totalorder %s21, 0
      %p109 = por %p107, %p108
      %p110 = scmp.ne.s32.totalorder %s99, %s102
      %p111 = scmp.eq.s32.totalorder %s26, 1
      %p112 = por %p110, %p111
      %p113 = scmp.ne.s32.totalorder %s102, %s103
      %p114 = scmp.eq.s32.totalorder %s26, 0
      %p115 = por %p113, %p114
      %p116 = scmp.ne.s32.totalorder %s102, %s103
      %p117 = scmp.eq.s32.totalorder %s27, 1
      %p118 = por %p116, %p117
      %p120 = scmp.ne.s32.totalorder %s103, %s119
      %p121 = scmp.eq.s32.totalorder %s27, 0
      %p122 = por %p120, %p121
      %s123 = ssub.s32 %s21, %s28
      %p124 = scmp.eq.s32.totalorder %s123, 0
      %s126 = sadd.s32 %s125, 1
      %s127 = scalar_select %p124, %s125, %s126
      %p130 = pneg %p124
      %p131 = scmp.eq.s32.totalorder %s21, 1
      %p132 = por %p130, %p131
      %p133 = scmp.ne.s32.totalorder %s125, %s128
      %p134 = scmp.eq.s32.totalorder %s21, 0
      %p135 = por %p133, %p134
      %p136 = scmp.ne.s32.totalorder %s125, %s128
      %p137 = scmp.eq.s32.totalorder %s26, 1
      %p138 = por %p136, %p137
      %p139 = scmp.ne.s32.totalorder %s128, %s129
      %p140 = scmp.eq.s32.totalorder %s26, 0
      %p141 = por %p139, %p140
      %p142 = scmp.ne.s32.totalorder %s128, %s129
      %p143 = scmp.eq.s32.totalorder %s27, 1
      %p144 = por %p142, %p143
      %p146 = scmp.ne.s32.totalorder %s129, %s145
      %p147 = scmp.eq.s32.totalorder %s27, 0
      %p148 = por %p146, %p147
      %p149 = scmp.le.s32.totalorder 1, %s21
      %p150 = scmp.lt.s32.totalorder %s21, 3
      %p151 = pnand %p149, %p150
      %p152 = pneg %p151
      // Predicated region
      $region9: #{tpu_custom_call.1} parent=5 // pred_check
        _
      $region10: #{tpu_custom_call.1} parent=5 // pred_check_branch
        %154 = sbr.rel (%p151) target = $region12
      $region11: #{tpu_custom_call.1} parent=5 // pred_region
        %s155 = ssub.s32 %s21, 1
        // Predicated region
        $region13: #{tpu_custom_call.1} parent=11 // pred_check
          %p156 = pneg %p42
        $region14: #{tpu_custom_call.1} parent=11 // pred_check_branch
          %158 = sbr.rel (%p156) target = $region16
        $region15: #{tpu_custom_call.1} parent=11 // pred_region
          %160 = vsyncadd [#allocation5], 0
          %s162 = sshll.u32 %s0, 4
          %s163 = int_to_ptr.hbm [resolvable:$true] %s162
          %165 = dma.hbm_to_smem %s163, 32, [#allocation2], [#allocation5]
        $region16: #{tpu_custom_call.1} parent=11 // pred_fallthru
          _
        // Predicated region
        $region17: #{tpu_custom_call.1} parent=11 // pred_check
          %p166 = pneg %p63
        $region18: #{tpu_custom_call.1} parent=11 // pred_check_branch
          %168 = sbr.rel (%p166) target = $region20
        $region19: #{tpu_custom_call.1} parent=11 // pred_region
          %170 = vsyncadd [#allocation7], 0
          %s172 = sshll.u32 %s1, 4
          %s173 = int_to_ptr.hbm [resolvable:$true] %s172
          %175 = dma.hbm_to_smem %s173, 64, [#allocation6], [#allocation7]
        $region20: #{tpu_custom_call.1} parent=11 // pred_fallthru
          _
      $region12: #{tpu_custom_call.1} parent=5 // pred_fallthru
        _
      %p176 = scmp.lt.s32.totalorder %s21, 2
      // Predicated region
      $region21: #{tpu_custom_call.1} parent=5 // pred_check
        %p177 = pneg %p176
      $region22: #{tpu_custom_call.1} parent=5 // pred_check_branch
        %179 = sbr.rel (%p177) target = $region24
      $region23: #{tpu_custom_call.1} parent=5 // pred_region
        // Predicated region
        $region25: #{tpu_custom_call.1} parent=23 // pred_check
          %p180 = pneg %p83
        $region26: #{tpu_custom_call.1} parent=23 // pred_check_branch
          %182 = sbr.rel (%p180) target = $region28
        $region27: #{tpu_custom_call.1} parent=23 // pred_region
          %s183 = sand.u32 %s73, 1
          %s184 = scalar_lea.sflag [#allocation3], %s183
          %s185 = sand.u32 %s73, 1
          %s186 = smul.addr %s185, 8
          %s187 = scalar_lea.vmem [#allocation8], %s186
          %189 = vsyncadd %s184, 0
          %s190 = smul.addr %s21, 2
          %s191 = smul.addr %s190, 4
          %s192 = scalar_lea.hbm %s2, %s191
          %s194 = sshll.u32 %s192, 4
          %s195 = int_to_ptr.hbm [resolvable:$true] %s194
          %s196 = sshll.u32 %s187, 4
          %s197 = int_to_ptr.vmem [resolvable:$true] %s196
          %199 = dma.hbm_to_vmem [thread:$0]  %s195, 128, %s197, %s184
        $region28: #{tpu_custom_call.1} parent=23 // pred_fallthru
          _
        // Predicated region
        $region29: #{tpu_custom_call.1} parent=23 // pred_check
          %p200 = pneg %p109
        $region30: #{tpu_custom_call.1} parent=23 // pred_check_branch
          %202 = sbr.rel (%p200) target = $region32
        $region31: #{tpu_custom_call.1} parent=23 // pred_region
          %s203 = sand.u32 %s99, 1
          %s204 = scalar_lea.sflag [#allocation10], %s203
          %s205 = sand.u32 %s99, 1
          %s206 = smul.addr %s205, 8
          %s207 = scalar_lea.vmem [#allocation9], %s206
          %209 = vsyncadd %s204, 0
          %s210 = smul.addr %s21, 2
          %s211 = smul.addr %s210, 4
          %s212 = scalar_lea.hbm %s3, %s211
          %s214 = sshll.u32 %s212, 4
          %s215 = int_to_ptr.hbm [resolvable:$true] %s214
          %s216 = sshll.u32 %s207, 4
          %s217 = int_to_ptr.vmem [resolvable:$true] %s216
          %219 = dma.hbm_to_vmem [thread:$0]  %s215, 128, %s217, %s204
        $region32: #{tpu_custom_call.1} parent=23 // pred_fallthru
          _
      $region24: #{tpu_custom_call.1} parent=5 // pred_fallthru
        _
      %p220 = scmp.le.s32.totalorder 1, %s21
      %p221 = scmp.lt.s32.totalorder %s21, 3
      %p222 = pnand %p220, %p221
      %p223 = pneg %p222
      // Predicated region
      $region33: #{tpu_custom_call.1} parent=5 // pred_check
        _
      $region34: #{tpu_custom_call.1} parent=5 // pred_check_branch
        %225 = sbr.rel (%p222) target = $region36
      $region35: #{tpu_custom_call.1} parent=5 // pred_region
        %s226 = ssub.s32 %s21, 1
        // Predicated region
        $region37: #{tpu_custom_call.1} parent=35 // pred_check
          %p227 = pneg %p42
        $region38: #{tpu_custom_call.1} parent=35 // pred_check_branch
          %229 = sbr.rel (%p227) target = $region40
        $region39: #{tpu_custom_call.1} parent=35 // pred_region
          %231 = dma.done [#allocation5], 32
        $region40: #{tpu_custom_call.1} parent=35 // pred_fallthru
          _
        // Predicated region
        $region41: #{tpu_custom_call.1} parent=35 // pred_check
          %p232 = pneg %p63
        $region42: #{tpu_custom_call.1} parent=35 // pred_check_branch
          %234 = sbr.rel (%p232) target = $region44
        $region43: #{tpu_custom_call.1} parent=35 // pred_region
          %236 = dma.done [#allocation7], 64
        $region44: #{tpu_custom_call.1} parent=35 // pred_fallthru
          _
        %s237 = sand.u32 %s76, 1
        %s238 = scalar_lea.sflag [#allocation3], %s237
        %s239 = sand.u32 %s76, 1
        %s240 = smul.addr %s239, 8
        %s241 = scalar_lea.vmem [#allocation8], %s240
        // Predicated region
        $region45: #{tpu_custom_call.1} parent=35 // pred_check
          %p242 = pneg %p89
        $region46: #{tpu_custom_call.1} parent=35 // pred_check_branch
          %244 = sbr.rel (%p242) target = $region48
        $region47: #{tpu_custom_call.1} parent=35 // pred_region
          %246 = dma.done %s238, 128
        $region48: #{tpu_custom_call.1} parent=35 // pred_fallthru
          _
        %s247 = sand.u32 %s102, 1
        %s248 = scalar_lea.sflag [#allocation10], %s247
        %s249 = sand.u32 %s102, 1
        %s250 = smul.addr %s249, 8
        %s251 = scalar_lea.vmem [#allocation9], %s250
        // Predicated region
        $region49: #{tpu_custom_call.1} parent=35 // pred_check
          %p252 = pneg %p115
        $region50: #{tpu_custom_call.1} parent=35 // pred_check_branch
          %254 = sbr.rel (%p252) target = $region52
        $region51: #{tpu_custom_call.1} parent=35 // pred_region
          %256 = dma.done %s248, 128
        $region52: #{tpu_custom_call.1} parent=35 // pred_fallthru
          _
        %257 = sfence
        %p258 = pneg %p42
        %p259 = pneg %p39
        %p260 = pneg %p63
        %p261 = pneg %p60
        %s262 = sand.u32 %s76, 1
        %s263 = scalar_lea.sflag [#allocation3], %s262
        %s264 = sand.u32 %s76, 1
        %s265 = smul.addr %s264, 8
        %s266 = scalar_lea.vmem [#allocation8], %s265
        %p267 = pneg %p89
        %p268 = pneg %p86
        %s269 = sand.u32 %s102, 1
        %s270 = scalar_lea.sflag [#allocation10], %s269
        %s271 = sand.u32 %s102, 1
        %s272 = smul.addr %s271, 8
        %s273 = scalar_lea.vmem [#allocation9], %s272
        %p274 = pneg %p115
        %p275 = pneg %p112
        %p276 = pneg %p141
        %p277 = pneg %p138
        %s278 = sand.u32 %s128, 1
        %s279 = scalar_lea.sflag [#allocation4], %s278
        %s280 = sand.u32 %s128, 1
        %s281 = smul.addr %s280, 8
        %s282 = scalar_lea.vmem [#allocation11], %s281
        %s283 = smul.u32 %s26, 128
        %s284 = sld [smem:[#allocation2 + %s283]]
        %s285 = sadd.s32 %s283, 1
        %s286 = sld [smem:[#allocation2 + %s285]]
        %v287 = vld [vmem:[%s241] sm:$0xff]
        %v288 = vld [vmem:[%s251] sm:$0xff]
        %v289 = vstv %s284
        %v290 = vmul.f32 %v289, %v287
        %v291 = vstv %s286
        %v292 = vmul.f32 %v291, %v288
        %v293 = vadd.f32 %v290, %v292
        %s294 = sadd.s32 %s283, 2
        %s295 = sld [smem:[#allocation2 + %s294]]
        %v296 = vstv %s295
        %s297 = sld [smem:[#allocation6]]
        %v298 = vstv %s297
        %v299 = vmul.f32 %v298, %v293
        %v300 = vadd.f32 %v296, %v299
        %s301 = sld [smem:[#allocation6 + $0x80]]
        %v302 = vstv %s301
        %v303 = vmul.f32 %v302, %v293
        %v305 = vrot.slane %v303, 5
        %v306 = vrot.slane %v305, 4
        %v308 = vadd.f32 %v300, %v306
        %s309 = sld [smem:[#allocation6 + $0x100]]
        %v310 = vstv %s309
        %v311 = vmul.f32 %v310, %v293
        %v313 = vrot.slane %v311, 6
        %v314 = vrot.slane %v313, 4
        %v316 = vadd.f32 %v308, %v314
        %s317 = sld [smem:[#allocation6 + $0x180]]
        %v318 = vstv %s317
        %v319 = vmul.f32 %v318, %v293
        %v321 = vrot.slane %v319, 7
        %v322 = vrot.slane %v321, 4
        %v324 = vadd.f32 %v316, %v322
        %v325 = vsub.f32 %v324, %v288
        %v326 = vmul.f32 %v325, %v325
        %v328 = vrot.slane %v326, 3
        %vm329 = vcmask 1040384
        %v330 = vsel %vm329, %v326, %v328
        %v332 = vlaneseq
        %vm333 = vcmp.ge.s32.totalorder %v332, 0
        %vm334 = vcmp.lt.s32.totalorder %v332, 256
        %vm335 = vmand %vm333, %vm334
        %336 = vst.msk [vmem:[%s282] ss:$4 sm:$0x3] %vm335, %v330
        %s337 = sadd.s32 %s283, 3
        %s338 = sld [smem:[#allocation2 + %s337]]
        %v339 = vstv %s338
        %s340 = sld [smem:[#allocation6 + $0x1]]
        %v341 = vstv %s340
        %v342 = vmul.f32 %v341, %v293
        %v343 = vadd.f32 %v339, %v342
        %s344 = sld [smem:[#allocation6 + $0x81]]
        %v345 = vstv %s344
        %v346 = vmul.f32 %v345, %v293
        %v348 = vrot.slane %v346, 5
        %v349 = vrot.slane %v348, 4
        %v351 = vadd.f32 %v343, %v349
        %s352 = sld [smem:[#allocation6 + $0x101]]
        %v353 = vstv %s352
        %v354 = vmul.f32 %v353, %v293
        %v356 = vrot.slane %v354, 6
        %v357 = vrot.slane %v356, 4
        %v359 = vadd.f32 %v351, %v357
        %s360 = sld [smem:[#allocation6 + $0x181]]
        %v361 = vstv %s360
        %v362 = vmul.f32 %v361, %v293
        %v364 = vrot.slane %v362, 7
        %v365 = vrot.slane %v364, 4
        %v367 = vadd.f32 %v359, %v365
        %v369 = vrot.slane %v288, 5
        %v370 = vrot.slane %v369, 4
        %v372 = vsub.f32 %v367, %v370
        %v373 = vmul.f32 %v372, %v372
        %v375 = vrot.slane %v373, 3
        %v376 = vsel %vm329, %v373, %v375
        %s378 = scalar_lea.vmem %s282, 1 [#allocation11]
        %379 = vst.msk [vmem:[%s378] ss:$4 sm:$0x3] %vm335, %v376
        %s380 = sadd.s32 %s283, 4
        %s381 = sld [smem:[#allocation2 + %s380]]
        %v382 = vstv %s381
        %s383 = sld [smem:[#allocation6 + $0x2]]
        %v384 = vstv %s383
        %v385 = vmul.f32 %v384, %v293
        %v386 = vadd.f32 %v382, %v385
        %s387 = sld [smem:[#allocation6 + $0x82]]
        %v388 = vstv %s387
        %v389 = vmul.f32 %v388, %v293
        %v391 = vrot.slane %v389, 5
        %v392 = vrot.slane %v391, 4
        %v394 = vadd.f32 %v386, %v392
        %s395 = sld [smem:[#allocation6 + $0x102]]
        %v396 = vstv %s395
        %v397 = vmul.f32 %v396, %v293
        %v399 = vrot.slane %v397, 6
        %v400 = vrot.slane %v399, 4
        %v402 = vadd.f32 %v394, %v400
        %s403 = sld [smem:[#allocation6 + $0x182]]
        %v404 = vstv %s403
        %v405 = vmul.f32 %v404, %v293
        %v407 = vrot.slane %v405, 7
        %v408 = vrot.slane %v407, 4
        %v410 = vadd.f32 %v402, %v408
        %v411 = vrot.slane %v288, 6
        %v412 = vrot.slane %v411, 4
        %v414 = vsub.f32 %v410, %v412
        %v415 = vmul.f32 %v414, %v414
        %v417 = vrot.slane %v415, 3
        %v418 = vsel %vm329, %v415, %v417
        %s420 = scalar_lea.vmem %s282, 2 [#allocation11]
        %421 = vst.msk [vmem:[%s420] ss:$4 sm:$0x3] %vm335, %v418
        %s422 = sadd.s32 %s283, 5
        %s423 = sld [smem:[#allocation2 + %s422]]
        %v424 = vstv %s423
        %s425 = sld [smem:[#allocation6 + $0x3]]
        %v426 = vstv %s425
        %v427 = vmul.f32 %v426, %v293
        %v428 = vadd.f32 %v424, %v427
        %s429 = sld [smem:[#allocation6 + $0x83]]
        %v430 = vstv %s429
        %v431 = vmul.f32 %v430, %v293
        %v433 = vrot.slane %v431, 5
        %v434 = vrot.slane %v433, 4
        %v436 = vadd.f32 %v428, %v434
        %s437 = sld [smem:[#allocation6 + $0x103]]
        %v438 = vstv %s437
        %v439 = vmul.f32 %v438, %v293
        %v441 = vrot.slane %v439, 6
        %v442 = vrot.slane %v441, 4
        %v444 = vadd.f32 %v436, %v442
        %s445 = sld [smem:[#allocation6 + $0x183]]
        %v446 = vstv %s445
        %v447 = vmul.f32 %v446, %v293
        %v449 = vrot.slane %v447, 7
        %v450 = vrot.slane %v449, 4
        %v452 = vadd.f32 %v444, %v450
        %v453 = vrot.slane %v288, 7
        %v454 = vrot.slane %v453, 4
        %v456 = vsub.f32 %v452, %v454
        %v457 = vmul.f32 %v456, %v456
        %v459 = vrot.slane %v457, 3
        %v460 = vsel %vm329, %v457, %v459
        %s462 = scalar_lea.vmem %s282, 3 [#allocation11]
        %463 = vst.msk [vmem:[%s462] ss:$4 sm:$0x3] %vm335, %v460
        %s464 = sand.u32 %s128, 1
        %s465 = scalar_lea.sflag [#allocation4], %s464
        %s466 = sand.u32 %s128, 1
        %s467 = smul.addr %s466, 8
        %s468 = scalar_lea.vmem [#allocation11], %s467
        // Predicated region
        $region53: #{tpu_custom_call.1} parent=35 // pred_check
          %p469 = pneg %p138
        $region54: #{tpu_custom_call.1} parent=35 // pred_check_branch
          %471 = sbr.rel (%p469) target = $region56
        $region55: #{tpu_custom_call.1} parent=35 // pred_region
          %473 = vsyncadd %s465, 0
          %s474 = smul.addr %s26, 2
          %s475 = smul.addr %s474, 4
          %s476 = scalar_lea.hbm %s4, %s475
          %s478 = sshll.u32 %s468, 4
          %s479 = int_to_ptr.vmem [resolvable:$true] %s478
          %s480 = sshll.u32 %s476, 4
          %s481 = int_to_ptr.hbm [resolvable:$true] %s480
          %483 = dma.vmem_to_hbm [thread:$0]  %s479, 128, %s481, %s465
        $region56: #{tpu_custom_call.1} parent=35 // pred_fallthru
          _
      $region36: #{tpu_custom_call.1} parent=5 // pred_fallthru
        _
      %p484 = scmp.le.s32.totalorder 2, %s21
      // Predicated region
      $region57: #{tpu_custom_call.1} parent=5 // pred_check
        %p485 = pneg %p484
      $region58: #{tpu_custom_call.1} parent=5 // pred_check_branch
        %487 = sbr.rel (%p485) target = $region60
      $region59: #{tpu_custom_call.1} parent=5 // pred_region
        %s488 = ssub.s32 %s21, 2
        // Predicated region
        $region61: #{tpu_custom_call.1} parent=59 // pred_check
          %p489 = pneg %p144
        $region62: #{tpu_custom_call.1} parent=59 // pred_check_branch
          %491 = sbr.rel (%p489) target = $region64
        $region63: #{tpu_custom_call.1} parent=59 // pred_region
          %s492 = sand.u32 %s129, 1
          %s493 = scalar_lea.sflag [#allocation4], %s492
          %s494 = sand.u32 %s129, 1
          %s495 = smul.addr %s494, 8
          %s496 = scalar_lea.vmem [#allocation11], %s495
          %498 = dma.done %s493, 128
        $region64: #{tpu_custom_call.1} parent=59 // pred_fallthru
          _
      $region60: #{tpu_custom_call.1} parent=5 // pred_fallthru
        _
    $region6: #{tpu_custom_call.1} parent=1 // loop_footer
      %s25 = sadd.s32 1, %s21
    $region7: #{tpu_custom_call.1} parent=1 // loop_footer_branch
      %20 = sbr.rel target = $region3
    $region8: #{tpu_custom_call.1} parent=1 // loop_exit
      _
    %499 = vsyncpa [#allocation3], 1
    %s500 = scalar_lea.sflag [#allocation3], 1
    %501 = vsyncpa %s500, 1
    %502 = vsyncpa [#allocation10], 1
    %s503 = scalar_lea.sflag [#allocation10], 1
    %504 = vsyncpa %s503, 1
    %505 = vsyncpa [#allocation4], 1
    %s506 = scalar_lea.sflag [#allocation4], 1
    %507 = vsyncpa %s506, 1
    %508 = vsyncpa [#allocation5], 1
    %s509 = scalar_lea.sflag [#allocation5], 1
    %510 = vsyncpa %s509, 1
    %511 = vsyncpa [#allocation7], 1

</llo_original>
